<compile_context>
chip_gen: v6e
topology: v6e:2x2x1
jax: 0.10.0
libtpu: 0.0.40
codegen_flags: <defaults>
</compile_context>

<pallas_src>
import functools

import jax
import jax.numpy as jnp
from jax import lax
from jax.experimental import pallas as pl
from jax.experimental.pallas import tpu as pltpu


def fused_mha_kernel(x_ref, wqkv_ref, wo_ref, cos_ref, sin_ref, o_ref, acc_ref, *,
                     head_dim, q_tile):
    """One (batch, head) grid step: QKV slice + RoPE + causal attention + out-proj
    partial accumulation into a (T, D) f32 VMEM scratch."""
    h = pl.program_id(1)
    num_heads = pl.num_programs(1)

    @pl.when(h == 0)
    def _():
        acc_ref[...] = jnp.zeros_like(acc_ref)

    hd = head_dim
    half = hd // 2

    # Per-head fused QKV projection: (T, D) @ (D, 3*hd), bf16 MXU, f32 accum.
    x = x_ref[0]                                                       # (T, D) bf16
    qkv = jnp.dot(x, wqkv_ref[0], preferred_element_type=jnp.float32)  # (T, 3hd) f32

    cos = cos_ref[...]        # (T, hd) f32
    sin_s = sin_ref[...]      # (T, hd) f32, sign-folded: [-sin | +sin]

    def rope(t):
        # rotate_half(t) = concat([-t2, t1]) == concat([t2, t1]) * sign; the sign is
        # folded into sin_s host-side, so only a swap-halves + FMA remains.
        # TODO(synk): for hd a multiple of 128 lanes, use pltpu.roll(t, half, -1)
        # so the swap runs in the XLU slot instead of lane-slice copies.
        rolled = jnp.concatenate([t[:, half:], t[:, :half]], axis=-1)
        return t * cos + rolled * sin_s

    q = rope(qkv[:, :hd]).astype(jnp.bfloat16)          # 1/sqrt(hd) folded into Wq
    k = rope(qkv[:, hd:2 * hd]).astype(jnp.bfloat16)
    v = qkv[:, 2 * hd:].astype(jnp.bfloat16)

    T = q.shape[0]
    tq = q_tile
    n_tiles = T // tq
    wo_h = wo_ref[0]                                    # (hd, D) bf16

    # Flash-style causal attention over static q/kv tiles (tiles above the
    # diagonal are skipped at trace time -> ~2x fewer score FLOPs at large T).
    # TODO(synk): for production T, move the q-tile loop onto a grid axis /
    # lax.fori_loop and stream K/V tiles; here one head's K/V fit VMEM.
    for qi in range(n_tiles):
        q_blk = q[qi * tq:(qi + 1) * tq]                # (tq, hd)
        m_i = jnp.full((tq, 1), -jnp.inf, jnp.float32)
        l_i = jnp.zeros((tq, 1), jnp.float32)
        ctx = jnp.zeros((tq, hd), jnp.float32)
        for ki in range(qi + 1):                        # causal tile skipping
            k_blk = k[ki * tq:(ki + 1) * tq]
            v_blk = v[ki * tq:(ki + 1) * tq]
            s = lax.dot_general(q_blk, k_blk, (((1,), (1,)), ((), ())),
                                preferred_element_type=jnp.float32)   # (tq, tq)
            if ki == qi:
                # Diagonal tile: mask from (tq,1) x (1,tq) iotas (no (T,T) int32
                # temporaries). Safe with -inf: the diagonal is always unmasked.
                row = lax.broadcasted_iota(jnp.int32, (tq, 1), 0)
                col = lax.broadcasted_iota(jnp.int32, (1, tq), 1)
                s = jnp.where(col > row, -jnp.inf, s)
            # Online softmax in f32 (no bf16 VPU/EUP path on v5e).
            m_new = jnp.maximum(m_i, jnp.max(s, axis=-1, keepdims=True))
            alpha = jnp.exp(m_i - m_new)
            p = jnp.exp(s - m_new)
            l_i = alpha * l_i + jnp.sum(p, axis=-1, keepdims=True)
            ctx = alpha * ctx + jnp.dot(p.astype(jnp.bfloat16), v_blk,
                                        preferred_element_type=jnp.float32)
            m_i = m_new
        # EUP approx reciprocal: rows sum to 1 within ~1e-3 (fine for inference).
        ctx = (ctx * pl.reciprocal(l_i, approx=True)).astype(jnp.bfloat16)
        # K-tiled (over heads) output projection: accumulate this head's (T, D)
        # contribution into the lane-dense f32 accumulator.
        acc_ref[qi * tq:(qi + 1) * tq, :] += jnp.dot(
            ctx, wo_h, preferred_element_type=jnp.float32)

    @pl.when(h == num_heads - 1)
    def _():
        o_ref[0] = acc_ref[...].astype(o_ref.dtype)


def multi_head_attention(x, wq, wk, wv, wo, cos, sin, num_heads,
                         out_dtype=jnp.float32):
    B, T, D = x.shape
    H = num_heads
    hd = D // H
    half = hd // 2
    scale = 1.0 / (hd ** 0.5)

    # bf16 MXU operands (f32 accumulation inside the kernel).
    x_bf = x.astype(jnp.bfloat16)

    # PyTorch Linear is x @ W.T: pre-transpose host-side, fold the attention scale
    # into W_query, and regroup into per-head blocks so the kernel never holds a
    # full (D, 3D) / (D, D) weight in VMEM.
    wq_t = (wq.T * scale).reshape(D, H, hd)
    wk_t = wk.T.reshape(D, H, hd)
    wv_t = wv.T.reshape(D, H, hd)
    wqkv = jnp.concatenate([wq_t, wk_t, wv_t], axis=-1)            # (D, H, 3*hd)
    wqkv = jnp.transpose(wqkv, (1, 0, 2)).astype(jnp.bfloat16)     # (H, D, 3*hd)
    wo_t = wo.T.reshape(H, hd, D).astype(jnp.bfloat16)             # (H, hd, D)

    cos_t = cos[:T].astype(jnp.float32)                            # (T, hd)
    sign = jnp.concatenate([-jnp.ones((half,), jnp.float32),
                            jnp.ones((half,), jnp.float32)])
    sin_t = sin[:T].astype(jnp.float32) * sign[None, :]            # sign-folded sin

    q_tile = min(128, T)
    assert T % q_tile == 0, "seq_len must be a multiple of the q tile"

    kernel = functools.partial(fused_mha_kernel, head_dim=hd, q_tile=q_tile)

    # TODO(synk): cos/sin (and x across the head axis) could be single-buffered
    # via pipeline_mode=pl.Buffered(1) to shave VMEM; omitted for compatibility.
    return pl.pallas_call(
        kernel,
        grid=(B, H),
        out_shape=jax.ShapeDtypeStruct((B, T, D), out_dtype),
        in_specs=[
            pl.BlockSpec((1, T, D), lambda b, h: (b, 0, 0)),        # x (const over h)
            pl.BlockSpec((1, D, 3 * hd), lambda b, h: (h, 0, 0)),   # per-head [Wq*s|Wk|Wv]^T
            pl.BlockSpec((1, hd, D), lambda b, h: (h, 0, 0)),       # per-head rows of Wo^T
            pl.BlockSpec((T, hd), lambda b, h: (0, 0)),             # cos
            pl.BlockSpec((T, hd), lambda b, h: (0, 0)),             # sin (sign-folded)
        ],
        out_specs=pl.BlockSpec((1, T, D), lambda b, h: (b, 0, 0)),  # lane-dense, resident over h
        scratch_shapes=[pltpu.VMEM((T, D), jnp.float32)],           # out-proj accumulator
        compiler_params=pltpu.CompilerParams(
            dimension_semantics=("parallel", "arbitrary"),
            vmem_limit_bytes=32 * 1024 * 1024),
    )(x_bf, wqkv, wo_t, cos_t, sin_t)


def precompute_rope_params(head_dim, theta_base, context_length):
    inv_freq = 1.0 / theta_base ** (
        jnp.arange(0, head_dim, 2)[: head_dim // 2].astype(jnp.float32) / head_dim)
    positions = jnp.arange(context_length).astype(jnp.float32)
    angles = positions[:, None] * inv_freq[None, :]
    angles = jnp.concatenate([angles, angles], axis=1)
    return jnp.cos(angles), jnp.sin(angles)


def reference_mha(x, wq, wk, wv, wo, cos, sin, num_heads):
    """Pure-JAX replica of the PyTorch forward pass (for verification)."""
    B, T, D = x.shape
    hd = D // num_heads

    def proj(w):
        y = x @ w.T
        return y.reshape(B, T, num_heads, hd).transpose(0, 2, 1, 3)

    q, k, v = proj(wq), proj(wk), proj(wv)

    def rope(t):
        c = cos[:T][None, None]
        s = sin[:T][None, None]
        t1, t2 = t[..., : hd // 2], t[..., hd // 2:]
        rot = jnp.concatenate([-t2, t1], axis=-1)
        return t * c + rot * s

    q, k = rope(q), rope(k)
    scores = q @ jnp.swapaxes(k, -1, -2)
    mask = jnp.triu(jnp.ones((T, T), dtype=bool), k=1)
    scores = jnp.where(mask, -jnp.inf, scores)
    w = jax.nn.softmax(scores / hd ** 0.5, axis=-1)
    ctx = (w @ v).transpose(0, 2, 1, 3).reshape(B, T, D)
    return ctx @ wo.T


if __name__ == "__main__":
    # Small config consistent with the module: emb_dim divisible by n_heads,
    # even head_dim, context_length >= seq_len.
    B, T, D, H = 2, 8, 32, 4
    context_length = 16

    key = jax.random.PRNGKey(0)
    kx, kq, kk, kv, ko = jax.random.split(key, 5)
    x = jax.random.normal(kx, (B, T, D), jnp.float32)
    wq = 0.02 * jax.random.normal(kq, (D, D), jnp.float32)   # (out, in), no bias
    wk = 0.02 * jax.random.normal(kk, (D, D), jnp.float32)
    wv = 0.02 * jax.random.normal(kv, (D, D), jnp.float32)
    wo = 0.02 * jax.random.normal(ko, (D, D), jnp.float32)

    cos, sin = precompute_rope_params(D // H, 10000, context_length)

    out = multi_head_attention(x, wq, wk, wv, wo, cos, sin, H)
    out = jax.block_until_ready(out)

    ref = reference_mha(x, wq, wk, wv, wo, cos, sin, H)
    assert out.shape == (B, T, D)
    err = jnp.max(jnp.abs(out - ref))
    assert jnp.allclose(out, ref, atol=2e-3, rtol=2e-2), f"max abs err {err}"

    print("KERNEL_OK")
</pallas_src>

<mosaic_0001>
module attributes {stable_mosaic.version = 11 : i64} {
  func.func @fused_mha_kernel(%arg0: i32, %arg1: i32, %arg2: memref<1x8x32xbf16, #tpu.memory_space<vmem>>, %arg3: memref<1x32x24xbf16, #tpu.memory_space<vmem>>, %arg4: memref<1x8x32xbf16, #tpu.memory_space<vmem>>, %arg5: memref<8x8xf32, #tpu.memory_space<vmem>>, %arg6: memref<8x8xf32, #tpu.memory_space<vmem>>, %arg7: memref<1x8x32xf32, #tpu.memory_space<vmem>>, %arg8: memref<8x32xf32, #tpu.memory_space<vmem>>) attributes {dimension_semantics = [#tpu.dimension_semantics<parallel>, #tpu.dimension_semantics<arbitrary>], iteration_bounds = array<i64: 2, 4>, scalar_prefetch = 0 : i64, scratch_operands = 1 : i64, tpu.core_type = #tpu.core_type<tc>, window_params = [{transform_indices = @transform_0, window_bounds = array<i64: 1, 8, 32>}, {transform_indices = @transform_1, window_bounds = array<i64: 1, 32, 24>}, {transform_indices = @transform_2, window_bounds = array<i64: 1, 8, 32>}, {pipeline_mode = #tpu.pipeline_mode<synchronous>, transform_indices = @transform_3, window_bounds = array<i64: 8, 8>}, {pipeline_mode = #tpu.pipeline_mode<synchronous>, transform_indices = @transform_4, window_bounds = array<i64: 8, 8>}, {transform_indices = @transform_5, window_bounds = array<i64: 1, 8, 32>}]} {
    %c0_i32 = arith.constant 0 : i32
    %0 = arith.cmpi eq, %arg1, %c0_i32 : i32
    %1 = arith.extui %0 : i1 to i32
    %c0_i32_0 = arith.constant 0 : i32
    %2 = arith.cmpi ne, %1, %c0_i32_0 : i32
    scf.if %2 {
      %cst_27 = arith.constant 0.000000e+00 : f32
      %69 = vector.broadcast %cst_27 : f32 to vector<8x32xf32>
      %c0_28 = arith.constant 0 : index
      %c0_29 = arith.constant 0 : index
      %70 = vector.load %arg8[%c0_28, %c0_29] : memref<8x32xf32, #tpu.memory_space<vmem>>, vector<8x32xf32>
      tpu.vector_store %arg8[%c0_28, %c0_29], %69 {strides = array<i32>} : memref<8x32xf32, #tpu.memory_space<vmem>>, vector<8x32xf32>,
    } else {
    }
    %c0 = arith.constant 0 : index
    %c0_1 = arith.constant 0 : index
    %c0_2 = arith.constant 0 : index
    %3 = vector.load %arg2[%c0, %c0_1, %c0_2] : memref<1x8x32xbf16, #tpu.memory_space<vmem>>, vector<1x8x32xbf16>
    %4 = vector.shape_cast %3 : vector<1x8x32xbf16> to vector<8x32xbf16>
    %c0_3 = arith.constant 0 : index
    %c0_4 = arith.constant 0 : index
    %c0_5 = arith.constant 0 : index
    %5 = vector.load %arg3[%c0_3, %c0_4, %c0_5] : memref<1x32x24xbf16, #tpu.memory_space<vmem>>, vector<1x32x24xbf16>
    %6 = vector.shape_cast %5 : vector<1x32x24xbf16> to vector<32x24xbf16>
    %cst = arith.constant dense<0.000000e+00> : vector<8x24xf32>
    %7 = tpu.matmul %4, %6, %cst {dimension_numbers = #tpu.dot_dimension_numbers<[1], [0], [0], [1], [0, 0, 1, 1], [], []>} : vector<8x32xbf16>, vector<32x24xbf16>, vector<8x24xf32> -> vector<8x24xf32>
    %c0_6 = arith.constant 0 : index
    %c0_7 = arith.constant 0 : index
    %8 = vector.load %arg5[%c0_6, %c0_7] : memref<8x8xf32, #tpu.memory_space<vmem>>, vector<8x8xf32>
    %c0_8 = arith.constant 0 : index
    %c0_9 = arith.constant 0 : index
    %9 = vector.load %arg6[%c0_8, %c0_9] : memref<8x8xf32, #tpu.memory_space<vmem>>, vector<8x8xf32>
    %10 = vector.extract_strided_slice %7 {offsets = [0, 0], sizes = [8, 8], strides = [1, 1]} : vector<8x24xf32> to vector<8x8xf32>
    %11 = vector.extract_strided_slice %10 {offsets = [0, 4], sizes = [8, 4], strides = [1, 1]} : vector<8x8xf32> to vector<8x4xf32>
    %12 = vector.extract_strided_slice %10 {offsets = [0, 0], sizes = [8, 4], strides = [1, 1]} : vector<8x8xf32> to vector<8x4xf32>
    %13 = tpu.concatenate %11, %12 in 1 : vector<8x4xf32>, vector<8x4xf32> -> vector<8x8xf32>
    %14 = arith.mulf %10, %8 : vector<8x8xf32>
    %15 = arith.mulf %13, %9 : vector<8x8xf32>
    %16 = arith.addf %14, %15 : vector<8x8xf32>
    %17 = arith.truncf %16 : vector<8x8xf32> to vector<8x8xbf16>
    %18 = vector.extract_strided_slice %7 {offsets = [0, 8], sizes = [8, 8], strides = [1, 1]} : vector<8x24xf32> to vector<8x8xf32>
    %19 = vector.extract_strided_slice %18 {offsets = [0, 4], sizes = [8, 4], strides = [1, 1]} : vector<8x8xf32> to vector<8x4xf32>
    %20 = vector.extract_strided_slice %18 {offsets = [0, 0], sizes = [8, 4], strides = [1, 1]} : vector<8x8xf32> to vector<8x4xf32>
    %21 = tpu.concatenate %19, %20 in 1 : vector<8x4xf32>, vector<8x4xf32> -> vector<8x8xf32>
    %22 = arith.mulf %18, %8 : vector<8x8xf32>
    %23 = arith.mulf %21, %9 : vector<8x8xf32>
    %24 = arith.addf %22, %23 : vector<8x8xf32>
    %25 = arith.truncf %24 : vector<8x8xf32> to vector<8x8xbf16>
    %26 = vector.extract_strided_slice %7 {offsets = [0, 16], sizes = [8, 8], strides = [1, 1]} : vector<8x24xf32> to vector<8x8xf32>
    %27 = arith.truncf %26 : vector<8x8xf32> to vector<8x8xbf16>
    %c0_10 = arith.constant 0 : index
    %c0_11 = arith.constant 0 : index
    %c0_12 = arith.constant 0 : index
    %28 = vector.load %arg4[%c0_10, %c0_11, %c0_12] : memref<1x8x32xbf16, #tpu.memory_space<vmem>>, vector<1x8x32xbf16>
    %29 = vector.shape_cast %28 : vector<1x8x32xbf16> to vector<8x32xbf16>
    %cst_13 = arith.constant 0xFF800000 : f32
    %30 = vector.broadcast %cst_13 : f32 to vector<8x1xf32>
    %cst_14 = arith.constant 0.000000e+00 : f32
    %31 = vector.broadcast %cst_14 : f32 to vector<8x1xf32>
    %cst_15 = arith.constant 0.000000e+00 : f32
    %32 = vector.broadcast %cst_15 : f32 to vector<8x8xf32>
    %cst_16 = arith.constant dense<0.000000e+00> : vector<8x8xf32>
    %33 = tpu.matmul %17, %25, %cst_16 {dimension_numbers = #tpu.dot_dimension_numbers<[1], [1], [0], [0], [0, 0, 1, 0], [], []>} : vector<8x8xbf16>, vector<8x8xbf16>, vector<8x8xf32> -> vector<8x8xf32>
    %34 = tpu.iota {dimensions = array<i32: 0>} : vector<8x1xi32>
    %35 = tpu.iota {dimensions = array<i32: 1>} : vector<1x8xi32>
    %36 = vector.broadcast %35 : vector<1x8xi32> to vector<8x8xi32>
    %37 = vector.broadcast %34 : vector<8x1xi32> to vector<8x8xi32>
    %38 = arith.cmpi sgt, %36, %37 : vector<8x8xi32>
    %cst_17 = arith.constant 0xFF800000 : f32
    %39 = vector.broadcast %cst_17 : f32 to vector<8x8xf32>
    %40 = arith.select %38, %39, %33 : vector<8x8xi1>, vector<8x8xf32>
    %cst_18 = arith.constant dense<0xFF800000> : vector<8xf32>
    %41 = vector.multi_reduction <maximumf>, %40, %cst_18 [1] : vector<8x8xf32> to vector<8xf32>
    %42 = vector.shape_cast %41 : vector<8xf32> to vector<8x1xf32>
    %43 = arith.maximumf %30, %42 : vector<8x1xf32>
    %44 = arith.subf %30, %43 : vector<8x1xf32>
    %45 = math.exp %44 : vector<8x1xf32>
    %46 = vector.broadcast %43 : vector<8x1xf32> to vector<8x8xf32>
    %47 = arith.subf %40, %46 : vector<8x8xf32>
    %48 = math.exp %47 : vector<8x8xf32>
    %49 = arith.mulf %45, %31 : vector<8x1xf32>
    %cst_19 = arith.constant dense<0.000000e+00> : vector<8xf32>
    %50 = vector.multi_reduction <add>, %48, %cst_19 [1] : vector<8x8xf32> to vector<8xf32>
    %51 = vector.shape_cast %50 : vector<8xf32> to vector<8x1xf32>
    %52 = arith.addf %49, %51 : vector<8x1xf32>
    %53 = vector.broadcast %45 : vector<8x1xf32> to vector<8x8xf32>
    %54 = arith.mulf %53, %32 : vector<8x8xf32>
    %55 = arith.truncf %48 : vector<8x8xf32> to vector<8x8xbf16>
    %cst_20 = arith.constant dense<0.000000e+00> : vector<8x8xf32>
    %56 = tpu.matmul %55, %27, %cst_20 {dimension_numbers = #tpu.dot_dimension_numbers<[1], [0], [0], [1], [0, 0, 1, 1], [], []>} : vector<8x8xbf16>, vector<8x8xbf16>, vector<8x8xf32> -> vector<8x8xf32>
    %57 = arith.addf %54, %56 : vector<8x8xf32>
    %58 = tpu.reciprocal %52 {approx = true} : vector<8x1xf32> -> vector<8x1xf32>
    %59 = vector.broadcast %58 : vector<8x1xf32> to vector<8x8xf32>
    %60 = arith.mulf %57, %59 : vector<8x8xf32>
    %61 = arith.truncf %60 : vector<8x8xf32> to vector<8x8xbf16>
    %c0_21 = arith.constant 0 : index
    %c0_22 = arith.constant 0 : index
    %62 = vector.load %arg8[%c0_21, %c0_22] : memref<8x32xf32, #tpu.memory_space<vmem>>, vector<8x32xf32>
    %cst_23 = arith.constant dense<0.000000e+00> : vector<8x32xf32>
    %63 = tpu.matmul %61, %29, %cst_23 {dimension_numbers = #tpu.dot_dimension_numbers<[1], [0], [0], [1], [0, 0, 1, 1], [], []>} : vector<8x8xbf16>, vector<8x32xbf16>, vector<8x32xf32> -> vector<8x32xf32>
    %64 = arith.addf %62, %63 : vector<8x32xf32>
    %c0_24 = arith.constant 0 : index
    %c0_25 = arith.constant 0 : index
    %65 = vector.load %arg8[%c0_24, %c0_25] : memref<8x32xf32, #tpu.memory_space<vmem>>, vector<8x32xf32>
    tpu.vector_store %arg8[%c0_24, %c0_25], %64 {strides = array<i32>} : memref<8x32xf32, #tpu.memory_space<vmem>>, vector<8x32xf32>,
    %c3_i32 = arith.constant 3 : i32
    %66 = arith.cmpi eq, %arg1, %c3_i32 : i32
    %67 = arith.extui %66 : i1 to i32
    %c0_i32_26 = arith.constant 0 : i32
    %68 = arith.cmpi ne, %67, %c0_i32_26 : i32
    scf.if %68 {
      %c0_27 = arith.constant 0 : index
      %c0_28 = arith.constant 0 : index
      %69 = vector.load %arg8[%c0_27, %c0_28] : memref<8x32xf32, #tpu.memory_space<vmem>>, vector<8x32xf32>
      %c0_29 = arith.constant 0 : index
      %c0_30 = arith.constant 0 : index
      %c0_31 = arith.constant 0 : index
      %70 = vector.load %arg7[%c0_29, %c0_30, %c0_31] : memref<1x8x32xf32, #tpu.memory_space<vmem>>, vector<1x8x32xf32>
      %71 = vector.shape_cast %70 : vector<1x8x32xf32> to vector<8x32xf32>
      %72 = vector.shape_cast %69 : vector<8x32xf32> to vector<1x8x32xf32>
      tpu.vector_store %arg7[%c0_29, %c0_30, %c0_31], %72 {strides = array<i32>} : memref<1x8x32xf32, #tpu.memory_space<vmem>>, vector<1x8x32xf32>,
    } else {
    }
    return
  }
  func.func @transform_0(%arg0: i32, %arg1: i32) -> (i32, i32, i32) {
    %c0_i32 = arith.constant 0 : i32
    %c0_i32_0 = arith.constant 0 : i32
    %c0_i32_1 = arith.constant 0 : i32
    return %arg0, %c0_i32, %c0_i32_0 : i32, i32, i32
  }
  func.func @transform_1(%arg0: i32, %arg1: i32) -> (i32, i32, i32) {
    %c0_i32 = arith.constant 0 : i32
    %c0_i32_0 = arith.constant 0 : i32
    %c0_i32_1 = arith.constant 0 : i32
    return %arg1, %c0_i32, %c0_i32_0 : i32, i32, i32
  }
  func.func @transform_2(%arg0: i32, %arg1: i32) -> (i32, i32, i32) {
    %c0_i32 = arith.constant 0 : i32
    %c0_i32_0 = arith.constant 0 : i32
    %c0_i32_1 = arith.constant 0 : i32
    return %arg1, %c0_i32, %c0_i32_0 : i32, i32, i32
  }
  func.func @transform_3(%arg0: i32, %arg1: i32) -> (i32, i32) {
    %c0_i32 = arith.constant 0 : i32
    %c0_i32_0 = arith.constant 0 : i32
    %c0_i32_1 = arith.constant 0 : i32
    return %c0_i32, %c0_i32_0 : i32, i32
  }
  func.func @transform_4(%arg0: i32, %arg1: i32) -> (i32, i32) {
    %c0_i32 = arith.constant 0 : i32
    %c0_i32_0 = arith.constant 0 : i32
    %c0_i32_1 = arith.constant 0 : i32
    return %c0_i32, %c0_i32_0 : i32, i32
  }
  func.func @transform_5(%arg0: i32, %arg1: i32) -> (i32, i32, i32) {
    %c0_i32 = arith.constant 0 : i32
    %c0_i32_0 = arith.constant 0 : i32
    %c0_i32_1 = arith.constant 0 : i32
    return %arg0, %c0_i32, %c0_i32_0 : i32, i32, i32
  }
}

</mosaic_0001>

<llo_original>
// kernel: tpu_custom_call.1
$region0: #{tpu_custom_call.1}
  #allocation0 [shape = 'u32[]', space=smem, size = 0x4, offset = 0x4, fixed_abs, tag = 'smem constant byte address 0x4 - core index']
  #allocation1 [shape = 'u32[144,128]{1,0:T(1,128)}', space=vmem, size = 0x12000, scoped, tag = 'internal scratch']
  #allocation2 [shape = 'f32[8,32]{1,0:T(8,128)}', space=vmem, size = 0x1000, scoped, tag = 'scratch operand']
  %s0 = inlined_call_operand.vmem [shape: bf16[2,8,32], index: 0, kind: input, shape index: {}]
  %s1 = inlined_call_operand.vmem [shape: bf16[4,32,24], index: 1, kind: input, shape index: {}]
  %s2 = inlined_call_operand.vmem [shape: bf16[4,8,32], index: 2, kind: input, shape index: {}]
  %s3 = inlined_call_operand.vmem [shape: f32[8,8], index: 3, kind: input, shape index: {}]
  %s4 = inlined_call_operand.vmem [shape: f32[8,8], index: 4, kind: input, shape index: {}]
  %s5 = inlined_call_operand.hbm [shape: f32[2,8,32], index: 5, kind: output, shape index: {}]
  %s6 = sld [smem:[#allocation0]]
  $region61: #{tpu_custom_call.1} parent=0
    _
  %s8 = ssub.s32 1, %s6
  %s9 = scalar_select 0, %s8, %s6
  $region1: #{tpu_custom_call.1} parent=0
    #allocation3 [shape = 'u8[8192]{0}', space=vmem, size = 0x2000, scoped, tag = 'output window, operand 0']
    #allocation4 [shape = 's32[2]{0}', space=sflag, size = 0x8, scoped, tag = 'scoped memory for tpu_custom_call.1']
    %10 = vsyncpa [#allocation4], 0
    %s11 = scalar_lea.sflag [#allocation4], 1
    %12 = vsyncpa %s11, 0
    loop: start=0, step=1, limit=10
    $region2: #{tpu_custom_call.1} parent=1 // loop_pre_header
      _
    $region3: #{tpu_custom_call.1} parent=1 // loop_header
      %s14 = sphi 0, %s18
      %p15 = scmp.ge.s32.totalorder %s14, 10
      %s21 = sphi 0, %s33
      %s22 = sphi 0, %s29
      %s23 = sphi 0, %s21
      %s24 = sphi 0, %s22
      %s25 = sphi 0, %s23
      %s26 = sphi 0, %s24
      %s36 = sphi 0, %s38
      %s39 = sphi 0, %s36
      %s40 = sphi 0, %s39
      %s56 = sphi 0, %s40
      %s62 = sphi 0, %s64
      %s65 = sphi 0, %s62
      %s66 = sphi 0, %s65
      %s82 = sphi 0, %s66
      %s88 = sphi 0, %s90
      %s91 = sphi 0, %s88
      %s92 = sphi 0, %s91
      %s108 = sphi 0, %s92
      %s112 = sphi 0, %s112
      %s114 = sphi 0, %s112
      %s115 = sphi 0, %s114
      %s129 = sphi 0, %s115
      %s133 = sphi 0, %s133
      %s135 = sphi 0, %s133
      %s136 = sphi 0, %s135
      %s150 = sphi 0, %s136
      %s156 = sphi 0, %s158
      %s159 = sphi 0, %s156
      %s160 = sphi 0, %s159
      %s176 = sphi 0, %s160
    $region4: #{tpu_custom_call.1} parent=1 // loop_header_branch
      %17 = sbr.rel (%p15) target = $region8
    $region5: #{tpu_custom_call.1} parent=1 // loop_body
      %s19 = ssub.s32 %s14, 1
      %s20 = ssub.s32 %s14, 2
      %s27 = sadd.s32 1, %s22
      %p28 = scmp.ge.s32.totalorder %s27, 4
      %s29 = scalar_select %p28, 0, %s27
      %s30 = sadd.s32 1, %s21
      %s31 = scalar_select %p28, %s30, %s21
      %p32 = scmp.ge.s32.totalorder %s31, 2
      %s33 = scalar_select %p32, 0, %s31
      %s34 = ssub.s32 %s21, %s33
      %p35 = scmp.eq.s32.totalorder %s34, 0
      %s37 = sadd.s32 %s36, 1
      %s38 = scalar_select %p35, %s36, %s37
      %p41 = pneg %p35
      %p42 = scmp.eq.s32.totalorder %s14, 7
      %p43 = por %p41, %p42
      %p44 = scmp.ne.s32.totalorder %s36, %s39
      %p45 = scmp.eq.s32.totalorder %s14, 0
      %p46 = por %p44, %p45
      %p47 = scmp.ne.s32.totalorder %s36, %s39
      %p48 = scmp.eq.s32.totalorder %s19, 7
      %p49 = por %p47, %p48
      %p50 = scmp.ne.s32.totalorder %s39, %s40
      %p51 = scmp.eq.s32.totalorder %s19, 0
      %p52 = por %p50, %p51
      %p53 = scmp.ne.s32.totalorder %s39, %s40
      %p54 = scmp.eq.s32.totalorder %s20, 7
      %p55 = por %p53, %p54
      %p57 = scmp.ne.s32.totalorder %s40, %s56
      %p58 = scmp.eq.s32.totalorder %s20, 0
      %p59 = por %p57, %p58
      %s60 = ssub.s32 %s22, %s29
      %p61 = scmp.eq.s32.totalorder %s60, 0
      %s63 = sadd.s32 %s62, 1
      %s64 = scalar_select %p61, %s62, %s63
      %p67 = pneg %p61
      %p68 = scmp.eq.s32.totalorder %s14, 7
      %p69 = por %p67, %p68
      %p70 = scmp.ne.s32.totalorder %s62, %s65
      %p71 = scmp.eq.s32.totalorder %s14, 0
      %p72 = por %p70, %p71
      %p73 = scmp.ne.s32.totalorder %s62, %s65
      %p74 = scmp.eq.s32.totalorder %s19, 7
      %p75 = por %p73, %p74
      %p76 = scmp.ne.s32.totalorder %s65, %s66
      %p77 = scmp.eq.s32.totalorder %s19, 0
      %p78 = por %p76, %p77
      %p79 = scmp.ne.s32.totalorder %s65, %s66
      %p80 = scmp.eq.s32.totalorder %s20, 7
      %p81 = por %p79, %p80
      %p83 = scmp.ne.s32.totalorder %s66, %s82
      %p84 = scmp.eq.s32.totalorder %s20, 0
      %p85 = por %p83, %p84
      %s86 = ssub.s32 %s22, %s29
      %p87 = scmp.eq.s32.totalorder %s86, 0
      %s89 = sadd.s32 %s88, 1
      %s90 = scalar_select %p87, %s88, %s89
      %p93 = pneg %p87
      %p94 = scmp.eq.s32.totalorder %s14, 7
      %p95 = por %p93, %p94
      %p96 = scmp.ne.s32.totalorder %s88, %s91
      %p97 = scmp.eq.s32.totalorder %s14, 0
      %p98 = por %p96, %p97
      %p99 = scmp.ne.s32.totalorder %s88, %s91
      %p100 = scmp.eq.s32.totalorder %s19, 7
      %p101 = por %p99, %p100
      %p102 = scmp.ne.s32.totalorder %s91, %s92
      %p103 = scmp.eq.s32.totalorder %s19, 0
      %p104 = por %p102, %p103
      %p105 = scmp.ne.s32.totalorder %s91, %s92
      %p106 = scmp.eq.s32.totalorder %s20, 7
      %p107 = por %p105, %p106
      %p109 = scmp.ne.s32.totalorder %s92, %s108
      %p110 = scmp.eq.s32.totalorder %s20, 0
      %p111 = por %p109, %p110
      %s113 = sadd.s32 %s112, 1
      %p116 = scmp.eq.s32.totalorder %s14, 7
      %p117 = scmp.ne.s32.totalorder %s112, %s114
      %p118 = scmp.eq.s32.totalorder %s14, 0
      %p119 = por %p117, %p118
      %p120 = scmp.ne.s32.totalorder %s112, %s114
      %p121 = scmp.eq.s32.totalorder %s19, 7
      %p122 = por %p120, %p121
      %p123 = scmp.ne.s32.totalorder %s114, %s115
      %p124 = scmp.eq.s32.totalorder %s19, 0
      %p125 = por %p123, %p124
      %p126 = scmp.ne.s32.totalorder %s114, %s115
      %p127 = scmp.eq.s32.totalorder %s20, 7
      %p128 = por %p126, %p127
      %p130 = scmp.ne.s32.totalorder %s115, %s129
      %p131 = scmp.eq.s32.totalorder %s20, 0
      %p132 = por %p130, %p131
      %s134 = sadd.s32 %s133, 1
      %p137 = scmp.eq.s32.totalorder %s14, 7
      %p138 = scmp.ne.s32.totalorder %s133, %s135
      %p139 = scmp.eq.s32.totalorder %s14, 0
      %p140 = por %p138, %p139
      %p141 = scmp.ne.s32.totalorder %s133, %s135
      %p142 = scmp.eq.s32.totalorder %s19, 7
      %p143 = por %p141, %p142
      %p144 = scmp.ne.s32.totalorder %s135, %s136
      %p145 = scmp.eq.s32.totalorder %s19, 0
      %p146 = por %p144, %p145
      %p147 = scmp.ne.s32.totalorder %s135, %s136
      %p148 = scmp.eq.s32.totalorder %s20, 7
      %p149 = por %p147, %p148
      %p151 = scmp.ne.s32.totalorder %s136, %s150
      %p152 = scmp.eq.s32.totalorder %s20, 0
      %p153 = por %p151, %p152
      %s154 = ssub.s32 %s21, %s33
      %p155 = scmp.eq.s32.totalorder %s154, 0
      %s157 = sadd.s32 %s156, 1
      %s158 = scalar_select %p155, %s156, %s157
      %p161 = pneg %p155
      %p162 = scmp.eq.s32.totalorder %s14, 7
      %p163 = por %p161, %p162
      %p164 = scmp.ne.s32.totalorder %s156, %s159
      %p165 = scmp.eq.s32.totalorder %s14, 0
      %p166 = por %p164, %p165
      %p167 = scmp.ne.s32.totalorder %s156, %s159
      %p168 = scmp.eq.s32.totalorder %s19, 7
      %p169 = por %p167, %p168
      %p170 = scmp.ne.s32.totalorder %s159, %s160
      %p171 = scmp.eq.s32.totalorder %s19, 0
      %p172 = por %p170, %p171
      %p173 = scmp.ne.s32.totalorder %s159, %s160
      %p174 = scmp.eq.s32.totalorder %s20, 7
      %p175 = por %p173, %p174
      %p177 = scmp.ne.s32.totalorder %s160, %s176
      %p178 = scmp.eq.s32.totalorder %s20, 0
      %p179 = por %p177, %p178
      %p180 = scmp.le.s32.totalorder 1, %s14
      %p181 = scmp.lt.s32.totalorder %s14, 9
      %p182 = pnand %p180, %p181
      %p183 = pneg %p182
      // Predicated region
      $region9: #{tpu_custom_call.1} parent=5 // pred_check
        _
      $region10: #{tpu_custom_call.1} parent=5 // pred_check_branch
        %185 = sbr.rel (%p182) target = $region12
      $region11: #{tpu_custom_call.1} parent=5 // pred_region
        %s186 = ssub.s32 %s14, 1
        // Predicated region
        $region13: #{tpu_custom_call.1} parent=11 // pred_check
          %p187 = pneg %p125
        $region14: #{tpu_custom_call.1} parent=11 // pred_check_branch
          %189 = sbr.rel (%p187) target = $region16
        $region15: #{tpu_custom_call.1} parent=11 // pred_region
          _
        $region16: #{tpu_custom_call.1} parent=11 // pred_fallthru
          _
        // Predicated region
        $region17: #{tpu_custom_call.1} parent=11 // pred_check
          %p190 = pneg %p146
        $region18: #{tpu_custom_call.1} parent=11 // pred_check_branch
          %192 = sbr.rel (%p190) target = $region20
        $region19: #{tpu_custom_call.1} parent=11 // pred_region
          _
        $region20: #{tpu_custom_call.1} parent=11 // pred_fallthru
          _
      $region12: #{tpu_custom_call.1} parent=5 // pred_fallthru
        _
      %p193 = scmp.lt.s32.totalorder %s14, 8
      // Predicated region
      $region21: #{tpu_custom_call.1} parent=5 // pred_check
        %p194 = pneg %p193
      $region22: #{tpu_custom_call.1} parent=5 // pred_check_branch
        %196 = sbr.rel (%p194) target = $region24
      $region23: #{tpu_custom_call.1} parent=5 // pred_region
        // Predicated region
        $region25: #{tpu_custom_call.1} parent=23 // pred_check
          %p197 = pneg %p46
        $region26: #{tpu_custom_call.1} parent=23 // pred_check_branch
          %199 = sbr.rel (%p197) target = $region28
        $region27: #{tpu_custom_call.1} parent=23 // pred_region
          %p200 = scmp.lt.s32.totalorder %s21, 1
          %s201 = scalar_select %p200, %s21, 1
          %s202 = smul.addr %s201, 4
          %s203 = scalar_lea.vmem %s0, %s202
        $region28: #{tpu_custom_call.1} parent=23 // pred_fallthru
          _
        // Predicated region
        $region29: #{tpu_custom_call.1} parent=23 // pred_check
          %p204 = pneg %p72
        $region30: #{tpu_custom_call.1} parent=23 // pred_check_branch
          %206 = sbr.rel (%p204) target = $region32
        $region31: #{tpu_custom_call.1} parent=23 // pred_region
          %p207 = scmp.lt.s32.totalorder %s22, 3
          %s208 = scalar_select %p207, %s22, 3
          %s209 = smul.addr %s208, 4
          %s210 = smul.addr %s209, 4
          %s211 = scalar_lea.vmem %s1, %s210
        $region32: #{tpu_custom_call.1} parent=23 // pred_fallthru
          _
        // Predicated region
        $region33: #{tpu_custom_call.1} parent=23 // pred_check
          %p212 = pneg %p98
        $region34: #{tpu_custom_call.1} parent=23 // pred_check_branch
          %214 = sbr.rel (%p212) target = $region36
        $region35: #{tpu_custom_call.1} parent=23 // pred_region
          %p215 = scmp.lt.s32.totalorder %s22, 3
          %s216 = scalar_select %p215, %s22, 3
          %s217 = smul.addr %s216, 4
          %s218 = scalar_lea.vmem %s2, %s217
        $region36: #{tpu_custom_call.1} parent=23 // pred_fallthru
          _
      $region24: #{tpu_custom_call.1} parent=5 // pred_fallthru
        _
      %p219 = scmp.le.s32.totalorder 1, %s14
      %p220 = scmp.lt.s32.totalorder %s14, 9
      %p221 = pnand %p219, %p220
      %p222 = pneg %p221
      // Predicated region
      $region37: #{tpu_custom_call.1} parent=5 // pred_check
        _
      $region38: #{tpu_custom_call.1} parent=5 // pred_check_branch
        %224 = sbr.rel (%p221) target = $region40
      $region39: #{tpu_custom_call.1} parent=5 // pred_region
        %s225 = ssub.s32 %s14, 1
        %p226 = scmp.lt.s32.totalorder %s23, 1
        %s227 = scalar_select %p226, %s23, 1
        %s228 = smul.addr %s227, 4
        %s229 = scalar_lea.vmem %s0, %s228
        %p230 = pneg %p52
        %p231 = pneg %p49
        %p232 = scmp.lt.s32.totalorder %s24, 3
        %s233 = scalar_select %p232, %s24, 3
        %s234 = smul.addr %s233, 4
        %s235 = smul.addr %s234, 4
        %s236 = scalar_lea.vmem %s1, %s235
        %p237 = pneg %p78
        %p238 = pneg %p75
        %p239 = scmp.lt.s32.totalorder %s24, 3
        %s240 = scalar_select %p239, %s24, 3
        %s241 = smul.addr %s240, 4
        %s242 = scalar_lea.vmem %s2, %s241
        %p243 = pneg %p104
        %p244 = pneg %p101
        %p245 = pneg %p125
        %p246 = pneg %p122
        %p247 = pneg %p146
        %p248 = pneg %p143
        %p249 = pneg %p172
        %p250 = pneg %p169
        %s251 = sand.u32 %s159, 1
        %s252 = scalar_lea.sflag [#allocation4], %s251
        %s253 = sand.u32 %s159, 1
        %s254 = smul.addr %s253, 8
        %s255 = scalar_lea.vmem [#allocation3], %s254
        %p256 = scmp.lt.s32.totalorder %s23, 1
        %s257 = scalar_select %p256, %s23, 1
        %s258 = smul.addr %s257, 4
        %s259 = scalar_lea.vmem %s0, %s258
        %p260 = scmp.lt.s32.totalorder %s24, 3
        %s261 = scalar_select %p260, %s24, 3
        %s262 = smul.addr %s261, 4
        %s263 = smul.addr %s262, 4
        %s264 = scalar_lea.vmem %s1, %s263
        %p265 = scmp.lt.s32.totalorder %s24, 3
        %s266 = scalar_select %p265, %s24, 3
        %s267 = smul.addr %s266, 4
        %s268 = scalar_lea.vmem %s2, %s267
        %p270 = scmp.eq.s32.totalorder %s24, 0
        // Predicated region
        $region41: #{tpu_custom_call.1} parent=39 // pred_check
          %p271 = pneg %p270
        $region42: #{tpu_custom_call.1} parent=39 // pred_check_branch
          %273 = sbr.rel (%p271) target = $region44
        $region43: #{tpu_custom_call.1} parent=39 // pred_region
          %vm274 = vcmask 261120
          %275 = vst.msk [vmem:[#allocation2] sm:$0xff] %vm274, 0.0
        $region44: #{tpu_custom_call.1} parent=39 // pred_fallthru
          _
        %v276 = vld [vmem:[%s259] sm:$0xf]
        %v277 = vld [vmem:[%s264] sm:$0xf]
        %v278 = vld [vmem:[%s264 + $0x4] sm:$0xf]
        %v279 = vld [vmem:[%s264 + $0x8] sm:$0xf]
        %v280 = vld [vmem:[%s264 + $0xc] sm:$0xf]
        %v285 = vunpack.c.l.b16 %v277
        %v286 = vunpack.c.l.b16 %v278
        %v287 = vunpack.c.l.b16 %v279
        %v288 = vunpack.c.l.b16 %v280
        %v289 = vpack.c.b16 %v286, %v285
        %v290 = vpack.c.b16 %v288, %v287
        %vm293 = vcmask 261120
        %v295 = vsel %vm293, %v276, 0
        %297 = vmatprep.subr.bf16.mxu0 0
        %298 = vmatpush1.bf16.msra.mxu0 0
        %299 = vmatprep.subr.bf16.mxu0 0
        %300 = vmatpush1.bf16.msra.mxu0 0
        %301 = vmatprep.subr.bf16.mxu0 0
        %302 = vmatpush1.bf16.msra.mxu0 0
        %303 = vmatprep.subr.bf16.mxu0 0
        %304 = vmatpush1.bf16.msra.mxu0 0
        %305 = vmatprep.subr.bf16.mxu0 0
        %306 = vmatpush1.bf16.msra.mxu0 0
        %307 = vmatprep.subr.bf16.mxu0 0
        %308 = vmatpush1.bf16.msra.mxu0 0
        %309 = vmatprep.subr.bf16.mxu0 0
        %310 = vmatpush1.bf16.msra.mxu0 %v290
        %311 = vmatprep.subr.bf16.mxu0 0
        %312 = vmatpush1.bf16.msra.mxu0 %v289
        %313 = vmatprep.subr.bf16.mxu0 0
        %314 = vmatpush2.bf16.msra.mxu0 0
        %315 = vmatprep.subr.bf16.mxu0 0
        %316 = vmatpush2.bf16.msra.mxu0 0
        %317 = vmatprep.subr.bf16.mxu0 0
        %318 = vmatpush2.bf16.msra.mxu0 0
        %319 = vmatprep.subr.bf16.mxu0 0
        %320 = vmatpush2.bf16.msra.mxu0 0
        %321 = vmatprep.subr.bf16.mxu0 0
        %322 = vmatpush2.bf16.msra.mxu0 0
        %323 = vmatprep.subr.bf16.mxu0 0
        %324 = vmatpush2.bf16.msra.mxu0 0
        %325 = vmatprep.subr.bf16.mxu0 0
        %326 = vmatpush2.bf16.msra.mxu0 0
        %327 = vmatprep.subr.bf16.mxu0 0
        %328 = vmatpush2.bf16.msra.mxu0 0
        %329 = vmatprep.mubr.bf16.mxu0 0
        %330 = vmatmul.mubr.bf16.gmra.mxu0 %v295
        %v331 = vpop.f32.mrf.mxu0
        %v332 = vadd.f32 0.0, %v331
        %v333 = vpop.f32.mrf.mxu0
        %v334 = vpop.f32.mrf.mxu0
        %v335 = vpop.f32.mrf.mxu0
        %336 = vdwg.mxu0
        %v337 = vld [vmem:[%s3] sm:$0xff]
        %v338 = vld [vmem:[%s4] sm:$0xff]
        %340 = vrot.lane.b32.xlu0 %v332, 124
        %v341 = vpop.permute.xlu0 %340
        %343 = vrot.lane.b32.xlu0 %v332, 4
        %v344 = vpop.permute.xlu0 %343
        %vm346 = vcmask 31744
        %v347 = vsel %vm346, %v341, %v344
        %v348 = vmul.f32 %v332, %v337
        %v349 = vmul.f32 %v347, %v338
        %v350 = vadd.f32 %v348, %v349
        %v351 = vpack.c.bf16 %v350, %v350
        %352 = vrot.lane.b32.xlu0 %v332, 116
        %v353 = vpop.permute.xlu0 %352
        %v355 = vsel %vm346, %v353, %v341
        %357 = vrot.lane.b32.xlu0 %v337, 8
        %v358 = vpop.permute.xlu0 %357
        %v360 = vmul.f32 %v332, %v358
        %v361 = vmul.f32 %v355, %v338
        %363 = vrot.lane.b32.xlu0 %v361, 8
        %v364 = vpop.permute.xlu0 %363
        %v366 = vadd.f32 %v360, %v364
        %v367 = vpack.c.bf16 %v366, %v366
        %v368 = vpack.c.bf16 %v332, %v332
        %v369 = vld [vmem:[%s268] sm:$0xf]
        %371 = vrot.lane.b32.xlu0 %v367, 120
        %v372 = vpop.permute.xlu0 %371
        %vm373 = vcmask 64512
        %v375 = vsel %vm373, %v351, 0
        %v378 = vsel %vm373, %v372, 0
        %380 = vmatprep.subr.bf16.mxu0 0
        %381 = vmatpush1.bf16.xpose.msra.mxu0 0
        %382 = vmatprep.subr.bf16.mxu0 0
        %383 = vmatpush1.bf16.xpose.msra.mxu0 0
        %384 = vmatprep.subr.bf16.mxu0 0
        %385 = vmatpush1.bf16.xpose.msra.mxu0 0
        %386 = vmatprep.subr.bf16.mxu0 0
        %387 = vmatpush1.bf16.xpose.msra.mxu0 0
        %388 = vmatprep.subr.bf16.mxu0 0
        %389 = vmatpush1.bf16.xpose.msra.mxu0 0
        %390 = vmatprep.subr.bf16.mxu0 0
        %391 = vmatpush1.bf16.xpose.msra.mxu0 0
        %392 = vmatprep.subr.bf16.mxu0 0
        %393 = vmatpush1.bf16.xpose.msra.mxu0 0
        %394 = vmatprep.subr.bf16.mxu0 0
        %395 = vmatpush1.bf16.xpose.msra.mxu0 %v378
        %396 = vmatprep.subr.bf16.mxu0 0
        %397 = vmatpush2.bf16.xpose.msra.mxu0 0
        %398 = vmatprep.subr.bf16.mxu0 0
        %399 = vmatpush2.bf16.xpose.msra.mxu0 0
        %400 = vmatprep.subr.bf16.mxu0 0
        %401 = vmatpush2.bf16.xpose.msra.mxu0 0
        %402 = vmatprep.subr.bf16.mxu0 0
        %403 = vmatpush2.bf16.xpose.msra.mxu0 0
        %404 = vmatprep.subr.bf16.mxu0 0
        %405 = vmatpush2.bf16.xpose.msra.mxu0 0
        %406 = vmatprep.subr.bf16.mxu0 0
        %407 = vmatpush2.bf16.xpose.msra.mxu0 0
        %408 = vmatprep.subr.bf16.mxu0 0
        %409 = vmatpush2.bf16.xpose.msra.mxu0 0
        %410 = vmatprep.subr.bf16.mxu0 0
        %411 = vmatpush2.bf16.xpose.msra.mxu0 0
        %412 = vmatprep.mubr.bf16.mxu0 0
        %413 = vmatmul.mubr.bf16.gmra.mxu0 %v375
        %v414 = vpop.f32.mrf.mxu0
        %v415 = vadd.f32 0.0, %v414
        %v416 = vpop.f32.mrf.mxu0
        %v417 = vpop.f32.mrf.mxu0
        %v418 = vpop.f32.mrf.mxu0
        %419 = vdwg.mxu0
        %v420 = vlaneseq
        %v421 = vshrl.u32 %v420, 7
        %v422 = vlaneseq
        %v423 = vand.u32 %v422, 127
        %vm424 = vcmp.gt.s32.totalorder %v423, %v421
        %v425 = vsel %vm424, -inf, %v415
        %v426 = vsel %vm373, %v425, -inf
        %427 = vmax.xlane.f32.xlu0 %v426
        %v428 = vpop.xlane.xlu0 %427
        %v429 = vsub.f32 -inf, %v428
        %v430 = vmul.f32 %v429, 1.442695
        %v431 = vpow.pop %v430
        %v432 = vsub.f32 %v425, %v428
        %v433 = vmul.f32 %v432, 1.442695
        %v434 = vpow.pop %v433
        %v435 = vmul.f32 %v431, 0.0
        %v436 = vsel %vm373, %v434, 0.0
        %437 = vadd.xlane.f32.xlu0 %v436
        %v438 = vpop.xlane.xlu0 %437
        %v439 = vadd.f32 %v435, %v438
        %v440 = vpack.c.bf16 %v434, %v434
        %442 = vrot.lane.b32.xlu0 %v368, 112
        %v443 = vpop.permute.xlu0 %442
        %v445 = vsel %vm373, %v440, 0
        %vm447 = vcmask 1043456
        %v449 = vsel %vm447, %v443, 0
        %451 = vmatprep.subr.bf16.mxu0 0
        %452 = vmatpush1.bf16.msra.mxu0 0
        %453 = vmatprep.subr.bf16.mxu0 0
        %454 = vmatpush1.bf16.msra.mxu0 0
        %455 = vmatprep.subr.bf16.mxu0 0
        %456 = vmatpush1.bf16.msra.mxu0 0
        %457 = vmatprep.subr.bf16.mxu0 0
        %458 = vmatpush1.bf16.msra.mxu0 0
        %459 = vmatprep.subr.bf16.mxu0 0
        %460 = vmatpush1.bf16.msra.mxu0 0
        %461 = vmatprep.subr.bf16.mxu0 0
        %462 = vmatpush1.bf16.msra.mxu0 0
        %463 = vmatprep.subr.bf16.mxu0 0
        %464 = vmatpush1.bf16.msra.mxu0 0
        %465 = vmatprep.subr.bf16.mxu0 0
        %466 = vmatpush1.bf16.msra.mxu0 %v449
        %467 = vmatprep.subr.bf16.mxu0 0
        %468 = vmatpush2.bf16.msra.mxu0 0
        %469 = vmatprep.subr.bf16.mxu0 0
        %470 = vmatpush2.bf16.msra.mxu0 0
        %471 = vmatprep.subr.bf16.mxu0 0
        %472 = vmatpush2.bf16.msra.mxu0 0
        %473 = vmatprep.subr.bf16.mxu0 0
        %474 = vmatpush2.bf16.msra.mxu0 0
        %475 = vmatprep.subr.bf16.mxu0 0
        %476 = vmatpush2.bf16.msra.mxu0 0
        %477 = vmatprep.subr.bf16.mxu0 0
        %478 = vmatpush2.bf16.msra.mxu0 0
        %479 = vmatprep.subr.bf16.mxu0 0
        %480 = vmatpush2.bf16.msra.mxu0 0
        %481 = vmatprep.subr.bf16.mxu0 0
        %482 = vmatpush2.bf16.msra.mxu0 0
        %483 = vmatprep.mubr.bf16.mxu0 0
        %484 = vmatmul.mubr.bf16.gmra.mxu0 %v445
        %v485 = vpop.f32.mrf.mxu0
        %v486 = vadd.f32 0.0, %v485
        %v487 = vpop.f32.mrf.mxu0
        %v488 = vpop.f32.mrf.mxu0
        %v489 = vpop.f32.mrf.mxu0
        %490 = vdwg.mxu0
        %v491 = vadd.f32 %v435, %v486
        %v492 = vrcp.pop %v439
        %v493 = vmul.f32 %v491, %v492
        %v494 = vpack.c.bf16 %v493, %v493
        %v495 = vld [vmem:[#allocation2] sm:$0xff]
        %v497 = vsel %vm373, %v494, 0
        %v500 = vsel %vm447, %v369, 0
        %502 = vmatprep.subr.bf16.mxu0 0
        %503 = vmatpush1.bf16.msra.mxu0 0
        %504 = vmatprep.subr.bf16.mxu0 0
        %505 = vmatpush1.bf16.msra.mxu0 0
        %506 = vmatprep.subr.bf16.mxu0 0
        %507 = vmatpush1.bf16.msra.mxu0 0
        %508 = vmatprep.subr.bf16.mxu0 0
        %509 = vmatpush1.bf16.msra.mxu0 0
        %510 = vmatprep.subr.bf16.mxu0 0
        %511 = vmatpush1.bf16.msra.mxu0 0
        %512 = vmatprep.subr.bf16.mxu0 0
        %513 = vmatpush1.bf16.msra.mxu0 0
        %514 = vmatprep.subr.bf16.mxu0 0
        %515 = vmatpush1.bf16.msra.mxu0 0
        %516 = vmatprep.subr.bf16.mxu0 0
        %517 = vmatpush1.bf16.msra.mxu0 %v500
        %518 = vmatprep.subr.bf16.mxu0 0
        %519 = vmatpush2.bf16.msra.mxu0 0
        %520 = vmatprep.subr.bf16.mxu0 0
        %521 = vmatpush2.bf16.msra.mxu0 0
        %522 = vmatprep.subr.bf16.mxu0 0
        %523 = vmatpush2.bf16.msra.mxu0 0
        %524 = vmatprep.subr.bf16.mxu0 0
        %525 = vmatpush2.bf16.msra.mxu0 0
        %526 = vmatprep.subr.bf16.mxu0 0
        %527 = vmatpush2.bf16.msra.mxu0 0
        %528 = vmatprep.subr.bf16.mxu0 0
        %529 = vmatpush2.bf16.msra.mxu0 0
        %530 = vmatprep.subr.bf16.mxu0 0
        %531 = vmatpush2.bf16.msra.mxu0 0
        %532 = vmatprep.subr.bf16.mxu0 0
        %533 = vmatpush2.bf16.msra.mxu0 0
        %534 = vmatprep.mubr.bf16.mxu0 0
        %535 = vmatmul.mubr.bf16.gmra.mxu0 %v497
        %v536 = vpop.f32.mrf.mxu0
        %v537 = vadd.f32 0.0, %v536
        %v538 = vpop.f32.mrf.mxu0
        %v539 = vpop.f32.mrf.mxu0
        %v540 = vpop.f32.mrf.mxu0
        %541 = vdwg.mxu0
        %v542 = vadd.f32 %v495, %v537
        %543 = vst.msk [vmem:[#allocation2] sm:$0xff] %vm293, %v542
        %p544 = scmp.eq.s32.totalorder %s24, 3
        // Predicated region
        $region45: #{tpu_custom_call.1} parent=39 // pred_check
          %p545 = pneg %p544
        $region46: #{tpu_custom_call.1} parent=39 // pred_check_branch
          %547 = sbr.rel (%p545) target = $region48
        $region47: #{tpu_custom_call.1} parent=39 // pred_region
          %v548 = vld [vmem:[#allocation2] sm:$0xff]
          %549 = vst.msk [vmem:[%s255] sm:$0xff] %vm293, %v548
        $region48: #{tpu_custom_call.1} parent=39 // pred_fallthru
          _
        %s550 = sand.u32 %s159, 1
        %s551 = scalar_lea.sflag [#allocation4], %s550
        %s552 = sand.u32 %s159, 1
        %s553 = smul.addr %s552, 8
        %s554 = scalar_lea.vmem [#allocation3], %s553
        // Predicated region
        $region49: #{tpu_custom_call.1} parent=39 // pred_check
          %p555 = pneg %p169
        $region50: #{tpu_custom_call.1} parent=39 // pred_check_branch
          %557 = sbr.rel (%p555) target = $region52
        $region51: #{tpu_custom_call.1} parent=39 // pred_region
          %s559 = ssub.s32 128, 128
          %560 = vsyncadd %s551, %s559
          %s561 = smul.addr %s23, 128
          %s562 = scalar_lea.hbm %s5, %s561
          %s564 = sshll.u32 %s554, 4
          %s565 = int_to_ptr.vmem [resolvable:$true] %s564
          %567 = dma.vmem_to_hbm [thread:$0]  %s565, 128, %s562, %s551
        $region52: #{tpu_custom_call.1} parent=39 // pred_fallthru
          _
      $region40: #{tpu_custom_call.1} parent=5 // pred_fallthru
        _
      %p568 = scmp.le.s32.totalorder 2, %s14
      // Predicated region
      $region53: #{tpu_custom_call.1} parent=5 // pred_check
        %p569 = pneg %p568
      $region54: #{tpu_custom_call.1} parent=5 // pred_check_branch
        %571 = sbr.rel (%p569) target = $region56
      $region55: #{tpu_custom_call.1} parent=5 // pred_region
        %s572 = ssub.s32 %s14, 2
        // Predicated region
        $region57: #{tpu_custom_call.1} parent=55 // pred_check
          %p573 = pneg %p175
        $region58: #{tpu_custom_call.1} parent=55 // pred_check_branch
          %575 = sbr.rel (%p573) target = $region60
        $region59: #{tpu_custom_call.1} parent=55 // pred_region
          %s576 = sand.u32 %s160, 1
          %s577 = scalar_lea.sflag [#allocation4], %s576
          %s578 = sand.u32 %s160, 1
          %s579 = smul.addr %s578, 8
          %s580 = scalar_lea.vmem [#allocation3], %s579
          %581 = dma.done %s577, 128
        $region60: #{tpu_custom_call.1} parent=55 // pred_fallthru
          _
      $region56: #{tpu_custom_call.1} parent=5 // pred_fallthru
        _
    $region6: #{tpu_custom_call.1} parent=1 // loop_footer
      %s18 = sadd.s32 1, %s14
    $region7: #{tpu_custom_call.1} parent=1 // loop_footer_branch
      %13 = sbr.rel target = $region3
    $region8: #{tpu_custom_call.1} parent=1 // loop_exit
      _
    %582 = vsyncpa [#allocation4], 1
    %s583 = scalar_lea.sflag [#allocation4], 1
    %584 = vsyncpa %s583, 1

</llo_original>
